<compile_context>
chip_gen: v7x
topology: tpu7x:2x2x1
jax: 0.10.0
libtpu: 0.0.40
codegen_flags: <defaults>
</compile_context>

<pallas_src>
import functools

import jax
import jax.numpy as jnp
from jax import lax
from jax.experimental import pallas as pl
from jax.experimental.pallas import tpu as pltpu

_LANES = 128
_SUBLANES = 8
_TILE_BYTES_PER_BUFFER = 4 * 1024 * 1024  # per input, per pipeline buffer


def _round_up(a, b):
    return -(-a // b) * b


def _cdiv(a, b):
    return -(-a // b)


def _min_sublanes(dtype):
    itemsize = jnp.dtype(dtype).itemsize
    return {4: 8, 2: 16, 1: 32}.get(itemsize, 8)


def _mse_partial_kernel(x_ref, t_ref, out_ref, *, rows, steps, tile_rows,
                        need_mask):
    p = pl.program_id(0)
    k = pl.program_id(1)

    @pl.when(k == 0)
    def _():
        out_ref[...] = jnp.zeros_like(out_ref)

    d = x_ref[...].astype(jnp.float32) - t_ref[...].astype(jnp.float32)
    dd = d * d

    if need_mask:
        # Grid over-covers the row range: zero the rows past the end of the
        # (statically known) array.  Fully out-of-range blocks (clamped to the
        # last real block in the index_map) get valid <= 0 and contribute 0.
        # The extra iota/compare/select is pure VPU work hidden under the HBM
        # stream.
        start = (p * steps + k) * tile_rows
        valid = rows - start
        row_id = lax.broadcasted_iota(jnp.int32, dd.shape, 0)
        dd = jnp.where(row_id < valid, dd, 0.0)

    # (tile_rows, 128) -> (8, 128): vreg relabel + elementwise adds (no XLU),
    # accumulated straight into the resident output block.
    out_ref[...] += jnp.sum(dd.reshape(-1, _SUBLANES, _LANES), axis=0)


def content_loss_forward(x, target, *, max_tile_rows=None):
    """ContentLoss.forward: returns (input, loss = mean((input - target)**2))."""
    assert x.shape == target.shape, (x.shape, target.shape)
    total = x.size
    assert total > 0

    xf = x.reshape(-1)
    tf = target.reshape(-1)
    rem = total % _LANES
    if rem:
        # TODO(synk): a non-128-multiple element count still costs one padded
        # copy (<=127 zeros appended); 128-aligned shapes take the zero-copy
        # path above this branch.
        pad = _LANES - rem
        xf = jnp.pad(xf, (0, pad))
        tf = jnp.pad(tf, (0, pad))
    rows = xf.size // _LANES
    x2 = xf.reshape(rows, _LANES)
    t2 = tf.reshape(rows, _LANES)

    min_sub = max(_min_sublanes(x.dtype), _min_sublanes(target.dtype))
    if max_tile_rows is None:
        itemsize = max(jnp.dtype(x.dtype).itemsize,
                       jnp.dtype(target.dtype).itemsize)
        max_tile_rows = _TILE_BYTES_PER_BUFFER // (_LANES * itemsize)
    max_tile_rows = max(_round_up(max_tile_rows, min_sub), min_sub)

    tile_rows = min(max_tile_rows, _round_up(rows, min_sub))
    nblocks = _cdiv(rows, tile_rows)
    num_par = 2 if nblocks >= 2 else 1          # v7x dual-TC split
    steps = _cdiv(nblocks, num_par)
    covered_blocks = num_par * steps
    need_mask = covered_blocks * tile_rows > rows

    if covered_blocks > nblocks:
        # One fully out-of-range block: clamp its DMA window to the last real
        # block; its contribution is masked to zero inside the kernel.
        in_map = lambda p, k: (jnp.minimum(p * steps + k, nblocks - 1), 0)
    else:
        in_map = lambda p, k: (p * steps + k, 0)

    in_tile_bytes = tile_rows * _LANES * (
        jnp.dtype(x.dtype).itemsize + jnp.dtype(target.dtype).itemsize)
    # 2 pipeline buffers per input + margin for the (8,128) output / internal
    # scratch.  <= ~20 MiB at the default tile: safe on v5e/v6e/v7x.
    vmem_limit = int(max(2 * in_tile_bytes + (4 << 20), 16 << 20))

    kernel = functools.partial(
        _mse_partial_kernel, rows=rows, steps=steps, tile_rows=tile_rows,
        need_mask=need_mask)

    partials = pl.pallas_call(
        kernel,
        out_shape=jax.ShapeDtypeStruct((num_par * _SUBLANES, _LANES),
                                       jnp.float32),
        grid_spec=pltpu.PrefetchScalarGridSpec(
            num_scalar_prefetch=0,
            grid=(num_par, steps),
            in_specs=[
                pl.BlockSpec((tile_rows, _LANES), in_map),
                pl.BlockSpec((tile_rows, _LANES), in_map),
            ],
            out_specs=pl.BlockSpec((_SUBLANES, _LANES), lambda p, k: (p, 0)),
        ),
        compiler_params=pltpu.CompilerParams(
            dimension_semantics=("parallel", "arbitrary"),
            vmem_limit_bytes=vmem_limit,
        ),
    )(x2, t2)

    loss = jnp.sum(partials) * jnp.float32(1.0 / total)
    # forward() returns the input unchanged (identity pass-through).
    # TODO(synk): PyTorch stores the loss as a module attribute (self.loss);
    # Pallas/JAX is stateless so it is returned explicitly.
    return x, loss


def _check(x, target, **kw):
    out, loss = content_loss_forward(x, target, **kw)
    out = jax.block_until_ready(out)
    loss = jax.block_until_ready(loss)
    ref = jnp.mean((x.astype(jnp.float32) - target.astype(jnp.float32)) ** 2)
    assert jnp.allclose(loss, ref, rtol=1e-5, atol=1e-6), (loss, ref)
    assert jnp.array_equal(out, x)


if __name__ == "__main__":
    key = jax.random.PRNGKey(0)
    k1, k2, k3, k4, k5, k6 = jax.random.split(key, 6)

    # Small conv-feature-map shape: NCHW = (2, 4, 16, 16) -> single block.
    x = jax.random.normal(k1, (2, 4, 16, 16), dtype=jnp.float32)
    t = jax.random.normal(k2, (2, 4, 16, 16), dtype=jnp.float32)
    _check(x, t)

    # Multi-block + dual parallel slices (same code path as large feature
    # maps), exercised cheaply by shrinking the max tile.
    _check(x, t, max_tile_rows=8)

    # Odd block count -> clamped fully-out-of-range block + row masking.
    x3 = jax.random.normal(k3, (2, 4, 16, 24), dtype=jnp.float32)
    t3 = jax.random.normal(k4, (2, 4, 16, 24), dtype=jnp.float32)
    _check(x3, t3, max_tile_rows=8)

    # Non-128-multiple element count -> sub-128 tail pad + partial-block mask.
    x4 = jax.random.normal(k5, (2, 3, 15, 15), dtype=jnp.float32)
    t4 = jax.random.normal(k6, (2, 3, 15, 15), dtype=jnp.float32)
    _check(x4, t4)

    # bf16 inputs (16-row sublane packing path; compute/accumulate in f32).
    _check(x.astype(jnp.bfloat16), t.astype(jnp.bfloat16))

    print("KERNEL_OK")
</pallas_src>

<mosaic_0001>
module attributes {stable_mosaic.version = 11 : i64} {
  func.func @_mse_partial_kernel(%arg0: i32, %arg1: i32, %arg2: memref<16x128xf32, #tpu.memory_space<vmem>>, %arg3: memref<16x128xf32, #tpu.memory_space<vmem>>, %arg4: memref<8x128xf32, #tpu.memory_space<vmem>>) attributes {dimension_semantics = [#tpu.dimension_semantics<parallel>, #tpu.dimension_semantics<arbitrary>], iteration_bounds = array<i64: 1, 1>, scalar_prefetch = 0 : i64, scratch_operands = 0 : i64, tpu.core_type = #tpu.core_type<tc>, window_params = [{transform_indices = @transform_0, window_bounds = array<i64: 16, 128>}, {transform_indices = @transform_1, window_bounds = array<i64: 16, 128>}, {transform_indices = @transform_2, window_bounds = array<i64: 8, 128>}]} {
    %c0_i32 = arith.constant 0 : i32
    %0 = arith.cmpi eq, %arg1, %c0_i32 : i32
    %1 = arith.extui %0 : i1 to i32
    %c0_i32_0 = arith.constant 0 : i32
    %2 = arith.cmpi ne, %1, %c0_i32_0 : i32
    scf.if %2 {
      %cst_8 = arith.constant 0.000000e+00 : f32
      %12 = vector.broadcast %cst_8 : f32 to vector<8x128xf32>
      %c0_9 = arith.constant 0 : index
      %c0_10 = arith.constant 0 : index
      %13 = vector.load %arg4[%c0_9, %c0_10] : memref<8x128xf32, #tpu.memory_space<vmem>>, vector<8x128xf32>
      tpu.vector_store %arg4[%c0_9, %c0_10], %12 {strides = array<i32>} : memref<8x128xf32, #tpu.memory_space<vmem>>, vector<8x128xf32>,
    } else {
    }
    %c0 = arith.constant 0 : index
    %c0_1 = arith.constant 0 : index
    %3 = vector.load %arg2[%c0, %c0_1] : memref<16x128xf32, #tpu.memory_space<vmem>>, vector<16x128xf32>
    %c0_2 = arith.constant 0 : index
    %c0_3 = arith.constant 0 : index
    %4 = vector.load %arg3[%c0_2, %c0_3] : memref<16x128xf32, #tpu.memory_space<vmem>>, vector<16x128xf32>
    %5 = arith.subf %3, %4 : vector<16x128xf32>
    %6 = arith.mulf %5, %5 : vector<16x128xf32>
    %c0_4 = arith.constant 0 : index
    %c0_5 = arith.constant 0 : index
    %7 = vector.load %arg4[%c0_4, %c0_5] : memref<8x128xf32, #tpu.memory_space<vmem>>, vector<8x128xf32>
    %8 = vector.shape_cast %6 : vector<16x128xf32> to vector<2x8x128xf32>
    %cst = arith.constant dense<0.000000e+00> : vector<8x128xf32>
    %9 = vector.multi_reduction <add>, %8, %cst [0] : vector<2x8x128xf32> to vector<8x128xf32>
    %10 = arith.addf %7, %9 : vector<8x128xf32>
    %c0_6 = arith.constant 0 : index
    %c0_7 = arith.constant 0 : index
    %11 = vector.load %arg4[%c0_6, %c0_7] : memref<8x128xf32, #tpu.memory_space<vmem>>, vector<8x128xf32>
    tpu.vector_store %arg4[%c0_6, %c0_7], %10 {strides = array<i32>} : memref<8x128xf32, #tpu.memory_space<vmem>>, vector<8x128xf32>,
    return
  }
  func.func @transform_0(%arg0: i32, %arg1: i32) -> (i32, i32) {
    %c1_i32 = arith.constant 1 : i32
    %0 = arith.muli %arg0, %c1_i32 : i32
    %1 = arith.addi %0, %arg1 : i32
    %c0_i32 = arith.constant 0 : i32
    %c0_i32_0 = arith.constant 0 : i32
    return %1, %c0_i32 : i32, i32
  }
  func.func @transform_1(%arg0: i32, %arg1: i32) -> (i32, i32) {
    %c1_i32 = arith.constant 1 : i32
    %0 = arith.muli %arg0, %c1_i32 : i32
    %1 = arith.addi %0, %arg1 : i32
    %c0_i32 = arith.constant 0 : i32
    %c0_i32_0 = arith.constant 0 : i32
    return %1, %c0_i32 : i32, i32
  }
  func.func @transform_2(%arg0: i32, %arg1: i32) -> (i32, i32) {
    %c0_i32 = arith.constant 0 : i32
    %c0_i32_0 = arith.constant 0 : i32
    return %arg0, %c0_i32 : i32, i32
  }
}

</mosaic_0001>

<llo_original>
// kernel: tpu_custom_call.1
$region0: #{tpu_custom_call.1}
  #allocation0 [shape = 'u32[]', space=smem, size = 0x4, offset = 0x4, fixed_abs, tag = 'smem constant byte address 0x4 - core index']
  #allocation1 [shape = 'u32[144,128]{1,0:T(1,128)}', space=vmem, size = 0x12000, scoped, tag = 'internal scratch']
  %s0 = inlined_call_operand.hbm [shape: f32[16,128], index: 0, kind: input, shape index: {}]
  %s1 = inlined_call_operand.hbm [shape: f32[16,128], index: 1, kind: input, shape index: {}]
  %s2 = inlined_call_operand.hbm [shape: f32[8,128], index: 2, kind: output, shape index: {}]
  %s3 = sld [smem:[#allocation0]]
  $region30: #{tpu_custom_call.1} parent=0
    _
  %s5 = ssub.s32 1, %s3
  %s6 = scalar_select 0, %s5, %s3
  $region1: #{tpu_custom_call.1} parent=0
    #allocation2 [shape = 'u8[8192]{0}', space=vmem, size = 0x2000, scoped, tag = 'input window, operand 0, single buffered']
    #allocation3 [shape = 's32[1]{0}', space=sflag, size = 0x4, scoped, tag = 'scoped memory for tpu_custom_call.1']
    #allocation4 [shape = 's32[1]{0}', space=sflag, size = 0x4, scoped, tag = 'scoped memory for tpu_custom_call.1']
    #allocation5 [shape = 'u8[8192]{0}', space=vmem, size = 0x2000, scoped, tag = 'input window, operand 1, single buffered']
    #allocation6 [shape = 's32[1]{0}', space=sflag, size = 0x4, scoped, tag = 'scoped memory for tpu_custom_call.1']
    #allocation7 [shape = 'u8[4096]{0}', space=vmem, size = 0x1000, scoped, tag = 'output window, operand 0, single buffered']
    %7 = vsyncpa [#allocation3], 0
    %8 = vsyncpa [#allocation6], 0
    %9 = vsyncpa [#allocation4], 0
    // Predicated region
    $region2: #{tpu_custom_call.1} parent=1 // pred_check
      _
    $region3: #{tpu_custom_call.1} parent=1 // pred_check_branch
      %11 = sbr.rel (0) target = $region5
    $region4: #{tpu_custom_call.1} parent=1 // pred_region
      %s12 = sadd.s32 0, 0
      %s13 = smul.u32 2, %s12
      %s15 = ssub.s32 256, 256
      %16 = vsyncadd [#allocation3], %s15
      %s17 = smul.addr %s13, 128
      %s18 = scalar_lea.hbm %s0, %s17
      %s19 = sshll.u32 [#allocation2], 4
      %s20 = int_to_ptr.vmem [resolvable:$true] %s19
      %25 = dma.hbm_to_vmem [thread:$0]  %s18, 256, %s20, [#allocation3], 128, 128, 8
    $region5: #{tpu_custom_call.1} parent=1 // pred_fallthru
      _
    // Predicated region
    $region6: #{tpu_custom_call.1} parent=1 // pred_check
      _
    $region7: #{tpu_custom_call.1} parent=1 // pred_check_branch
      %27 = sbr.rel (0) target = $region9
    $region8: #{tpu_custom_call.1} parent=1 // pred_region
      %s28 = sadd.s32 0, 0
      %s29 = smul.u32 2, %s28
      %s31 = ssub.s32 256, 256
      %32 = vsyncadd [#allocation6], %s31
      %s33 = smul.addr %s29, 128
      %s34 = scalar_lea.hbm %s1, %s33
      %s35 = sshll.u32 [#allocation5], 4
      %s36 = int_to_ptr.vmem [resolvable:$true] %s35
      %41 = dma.hbm_to_vmem [thread:$0]  %s34, 256, %s36, [#allocation6], 128, 128, 8
    $region9: #{tpu_custom_call.1} parent=1 // pred_fallthru
      _
    // Predicated region
    $region10: #{tpu_custom_call.1} parent=1 // pred_check
      _
    $region11: #{tpu_custom_call.1} parent=1 // pred_check_branch
      %43 = sbr.rel (0) target = $region13
    $region12: #{tpu_custom_call.1} parent=1 // pred_region
      %44 = dma.done [#allocation3], 256
    $region13: #{tpu_custom_call.1} parent=1 // pred_fallthru
      _
    // Predicated region
    $region14: #{tpu_custom_call.1} parent=1 // pred_check
      _
    $region15: #{tpu_custom_call.1} parent=1 // pred_check_branch
      %46 = sbr.rel (0) target = $region17
    $region16: #{tpu_custom_call.1} parent=1 // pred_region
      %47 = dma.done [#allocation6], 256
    $region17: #{tpu_custom_call.1} parent=1 // pred_fallthru
      _
    %s48 = sadd.s32 0, 0
    %s49 = smul.u32 2, %s48
    %s50 = sadd.s32 0, 0
    %s51 = smul.u32 2, %s50
    %p52 = scmp.eq.s32.totalorder 0, 0
    // Predicated region
    $region18: #{tpu_custom_call.1} parent=1 // pred_check
      %p53 = pneg %p52
    $region19: #{tpu_custom_call.1} parent=1 // pred_check_branch
      %55 = sbr.rel (%p53) target = $region21
    $region20: #{tpu_custom_call.1} parent=1 // pred_region
      %56 = vst [vmem:[#allocation7] sm:$0xff] 0.0
    $region21: #{tpu_custom_call.1} parent=1 // pred_fallthru
      _
    %v57 = vld [vmem:[#allocation2] sm:$0xff]
    %v58 = vld [vmem:[#allocation2 + $0x8] sm:$0xff]
    %v59 = vld [vmem:[#allocation5] sm:$0xff]
    %v60 = vld [vmem:[#allocation5 + $0x8] sm:$0xff]
    %v61 = vsub.f32 %v57, %v59
    %v62 = vsub.f32 %v58, %v60
    %v63 = vmul.f32 %v61, %v61
    %v64 = vmul.f32 %v62, %v62
    %v65 = vld [vmem:[#allocation7] sm:$0xff]
    %v66 = vadd.f32 %v63, %v64
    %v67 = vadd.f32 %v65, %v66
    %68 = vst [vmem:[#allocation7] sm:$0xff] %v67
    // Predicated region
    $region22: #{tpu_custom_call.1} parent=1 // pred_check
      _
    $region23: #{tpu_custom_call.1} parent=1 // pred_check_branch
      %70 = sbr.rel (0) target = $region25
    $region24: #{tpu_custom_call.1} parent=1 // pred_region
      %s72 = ssub.s32 128, 128
      %73 = vsyncadd [#allocation4], %s72
      %s75 = sshll.u32 [#allocation7], 4
      %s76 = int_to_ptr.vmem [resolvable:$true] %s75
      %78 = dma.vmem_to_hbm [thread:$0]  %s76, 128, %s2, [#allocation4]
    $region25: #{tpu_custom_call.1} parent=1 // pred_fallthru
      _
    // Predicated region
    $region26: #{tpu_custom_call.1} parent=1 // pred_check
      _
    $region27: #{tpu_custom_call.1} parent=1 // pred_check_branch
      %80 = sbr.rel (0) target = $region29
    $region28: #{tpu_custom_call.1} parent=1 // pred_region
      %81 = dma.done [#allocation4], 128
    $region29: #{tpu_custom_call.1} parent=1 // pred_fallthru
      _
    %82 = vsyncpa [#allocation3], 1
    %83 = vsyncpa [#allocation6], 1
    %84 = vsyncpa [#allocation4], 1

</llo_original>
